<compile_context>
chip_gen: v5e
topology: v5e:2x2
jax: 0.10.0
libtpu: 0.0.40
codegen_flags: <defaults>
</compile_context>

<pallas_src>
import jax
import jax.numpy as jnp
from jax.experimental import pallas as pl
from jax.experimental.pallas import tpu as pltpu


def _round_up(x: int, m: int) -> int:
    return ((x + m - 1) // m) * m


def mlp_kernel(x_ref, w_ref, b_ref, o_ref):
    # x_ref: (TB, D_in) f32   w_ref: (D_in, Dp) bf16   b_ref: (1, Dp) f32
    # o_ref: (TB, Dp) f32
    x_bf = x_ref[...].astype(jnp.bfloat16)               # in-kernel cast (VPU)
    out = jnp.dot(x_bf, w_ref[...],
                  preferred_element_type=jnp.float32)    # single MXU pass, f32 acc
    o_ref[...] = out + b_ref[...]                        # f32 bias add, lane-dense store


def prepare_params(w1, b1, w2, b2):
    """One-time weight prep (call once at init / load time, NOT per forward):
    fold the two bias-carrying Linears (no nonlinearity between them) into a
    single affine map in f32, pad the output dim to 128 lanes, cast the folded
    weight to bf16."""
    d_in, hidden = w1.shape
    d_out = w2.shape[1]
    w1f = w1.astype(jnp.float32)
    w2f = w2.astype(jnp.float32)
    w_eff = w1f @ w2f                                     # (d_in, d_out), exact fold in f32
    b_eff = b1.astype(jnp.float32) @ w2f + b2.astype(jnp.float32)

    Dp = _round_up(d_out, 128)
    w_eff_p = jnp.pad(w_eff, ((0, 0), (0, Dp - d_out))).astype(jnp.bfloat16)
    b_eff_p = jnp.pad(b_eff, (0, Dp - d_out)).reshape(1, Dp).astype(jnp.float32)
    return w_eff_p, b_eff_p, d_out


def fashion_mnist_model_v0(x_nchw, w_eff_p, b_eff_p, d_out, *, block_b: int = 512):
    """Forward pass. x_nchw: (B, C, H, W) float32.
    w_eff_p: (d_in, Dp) bf16 pre-padded folded weight, b_eff_p: (1, Dp) f32."""
    B = x_nchw.shape[0]
    d_in, Dp = w_eff_p.shape

    # nn.Flatten(): (B, C, H, W) -> (B, C*H*W)  (row-major, matches PyTorch)
    x_flat = x_nchw.reshape(B, -1).astype(jnp.float32)
    assert x_flat.shape[1] == d_in

    # Batch tile: multiple of 16 (bf16 sublane tile), capped at block_b.
    TB = min(block_b, _round_up(B, 16))
    Bp = _round_up(B, TB)
    # Keep >=2 grid steps when the batch allows it (v7x megacore sharding);
    # costs only ~0.35 us/step on single-TC parts, negligible here.
    if Bp // TB < 2 and B > 16:
        TB = max(16, _round_up((Bp + 1) // 2, 16))
        Bp = _round_up(B, TB)

    x_pad = x_flat if Bp == B else jnp.pad(x_flat, ((0, Bp - B), (0, 0)))

    grid = (Bp // TB,)
    flops = 2 * Bp * d_in * Dp
    bytes_accessed = (x_pad.size * 4 + w_eff_p.size * 2
                      + b_eff_p.size * 4 + Bp * Dp * 4)

    out_padded = pl.pallas_call(
        mlp_kernel,
        out_shape=jax.ShapeDtypeStruct((Bp, Dp), jnp.float32),
        grid=grid,
        in_specs=[
            pl.BlockSpec((TB, d_in), lambda i: (i, 0)),   # pipelined over batch
            pl.BlockSpec((d_in, Dp), lambda i: (0, 0)),   # resident folded weight
            pl.BlockSpec((1, Dp), lambda i: (0, 0)),      # resident folded bias
        ],
        out_specs=pl.BlockSpec((TB, Dp), lambda i: (i, 0)),
        compiler_params=pltpu.CompilerParams(
            dimension_semantics=("parallel",),
        ),
        cost_estimate=pl.CostEstimate(
            flops=flops, transcendentals=0, bytes_accessed=bytes_accessed),
    )(x_pad, w_eff_p, b_eff_p)

    # Slice away batch / output padding outside the kernel.
    return out_padded[:B, :d_out]


def init_params(key, d_in, hidden, d_out):
    """PyTorch nn.Linear init: U(-1/sqrt(fan_in), 1/sqrt(fan_in)), deterministic.
    Weights stored already transposed to (in, out) for the kernel."""
    k1, k2, k3, k4 = jax.random.split(key, 4)
    bound1 = 1.0 / jnp.sqrt(jnp.float32(d_in))
    bound2 = 1.0 / jnp.sqrt(jnp.float32(hidden))
    w1 = jax.random.uniform(k1, (d_in, hidden), jnp.float32, -bound1, bound1)
    b1 = jax.random.uniform(k2, (hidden,), jnp.float32, -bound1, bound1)
    w2 = jax.random.uniform(k3, (hidden, d_out), jnp.float32, -bound2, bound2)
    b2 = jax.random.uniform(k4, (d_out,), jnp.float32, -bound2, bound2)
    return w1, b1, w2, b2


if __name__ == "__main__":
    # Small shapes consistent with the module: batch=2, 1-channel 16x16 image
    # -> input_shape=256, hidden_units=32, output_shape=10.
    B, C, H, W = 2, 1, 16, 16
    d_in, hidden, d_out = C * H * W, 32, 10

    key = jax.random.PRNGKey(0)
    kx, kp = jax.random.split(key)
    x = jax.random.normal(kx, (B, C, H, W), jnp.float32)
    w1, b1, w2, b2 = init_params(kp, d_in, hidden, d_out)

    # One-time weight prep (fold + pad + bf16 cast), hoisted out of the
    # per-batch forward call.
    w_eff_p, b_eff_p, d_out_ = prepare_params(w1, b1, w2, b2)

    out = fashion_mnist_model_v0(x, w_eff_p, b_eff_p, d_out_)
    out = jax.block_until_ready(out)

    # Reference check (pure JAX, f32, unfolded two-Linear form). Tolerance
    # accounts for bf16 matmul operands in the kernel (f32 accumulation and
    # f32 weight fold keep the error well below it).
    x_flat = x.reshape(B, -1)
    ref = (x_flat @ w1 + b1) @ w2 + b2
    assert out.shape == (B, d_out)
    assert jnp.allclose(out, ref, atol=5e-2, rtol=5e-2), (
        f"max abs err {jnp.max(jnp.abs(out - ref))}")

    print("KERNEL_OK")
</pallas_src>

<mosaic_0001>
module attributes {stable_mosaic.version = 11 : i64} {
  func.func @mlp_kernel(%arg0: i32, %arg1: memref<16x256xf32, #tpu.memory_space<vmem>>, %arg2: memref<256x128xbf16, #tpu.memory_space<vmem>>, %arg3: memref<1x128xf32, #tpu.memory_space<vmem>>, %arg4: memref<16x128xf32, #tpu.memory_space<vmem>>) attributes {dimension_semantics = [#tpu.dimension_semantics<parallel>], iteration_bounds = array<i64: 1>, scalar_prefetch = 0 : i64, scratch_operands = 0 : i64, tpu.core_type = #tpu.core_type<tc>, window_params = [{transform_indices = @transform_0, window_bounds = array<i64: 16, 256>}, {pipeline_mode = #tpu.pipeline_mode<synchronous>, transform_indices = @transform_1, window_bounds = array<i64: 256, 128>}, {pipeline_mode = #tpu.pipeline_mode<synchronous>, transform_indices = @transform_2, window_bounds = array<i64: 1, 128>}, {transform_indices = @transform_3, window_bounds = array<i64: 16, 128>}]} {
    %c0 = arith.constant 0 : index
    %c0_0 = arith.constant 0 : index
    %0 = vector.load %arg1[%c0, %c0_0] : memref<16x256xf32, #tpu.memory_space<vmem>>, vector<16x256xf32>
    %1 = arith.truncf %0 : vector<16x256xf32> to vector<16x256xbf16>
    %c0_1 = arith.constant 0 : index
    %c0_2 = arith.constant 0 : index
    %2 = vector.load %arg2[%c0_1, %c0_2] : memref<256x128xbf16, #tpu.memory_space<vmem>>, vector<256x128xbf16>
    %cst = arith.constant dense<0.000000e+00> : vector<16x128xf32>
    %3 = tpu.matmul %1, %2, %cst {dimension_numbers = #tpu.dot_dimension_numbers<[1], [0], [0], [1], [0, 0, 1, 1], [], []>} : vector<16x256xbf16>, vector<256x128xbf16>, vector<16x128xf32> -> vector<16x128xf32>
    %c0_3 = arith.constant 0 : index
    %c0_4 = arith.constant 0 : index
    %4 = vector.load %arg3[%c0_3, %c0_4] : memref<1x128xf32, #tpu.memory_space<vmem>>, vector<1x128xf32>
    %5 = vector.broadcast %4 : vector<1x128xf32> to vector<16x128xf32>
    %6 = arith.addf %3, %5 : vector<16x128xf32>
    %c0_5 = arith.constant 0 : index
    %c0_6 = arith.constant 0 : index
    %7 = vector.load %arg4[%c0_5, %c0_6] : memref<16x128xf32, #tpu.memory_space<vmem>>, vector<16x128xf32>
    tpu.vector_store %arg4[%c0_5, %c0_6], %6 {strides = array<i32>} : memref<16x128xf32, #tpu.memory_space<vmem>>, vector<16x128xf32>,
    return
  }
  func.func @transform_0(%arg0: i32) -> (i32, i32) {
    %c0_i32 = arith.constant 0 : i32
    %c0_i32_0 = arith.constant 0 : i32
    return %arg0, %c0_i32 : i32, i32
  }
  func.func @transform_1(%arg0: i32) -> (i32, i32) {
    %c0_i32 = arith.constant 0 : i32
    %c0_i32_0 = arith.constant 0 : i32
    %c0_i32_1 = arith.constant 0 : i32
    return %c0_i32, %c0_i32_0 : i32, i32
  }
  func.func @transform_2(%arg0: i32) -> (i32, i32) {
    %c0_i32 = arith.constant 0 : i32
    %c0_i32_0 = arith.constant 0 : i32
    %c0_i32_1 = arith.constant 0 : i32
    return %c0_i32, %c0_i32_0 : i32, i32
  }
  func.func @transform_3(%arg0: i32) -> (i32, i32) {
    %c0_i32 = arith.constant 0 : i32
    %c0_i32_0 = arith.constant 0 : i32
    return %arg0, %c0_i32 : i32, i32
  }
}

</mosaic_0001>

<llo_original>
// kernel: tpu_custom_call.1
$region0: #{tpu_custom_call.1}
  #allocation0 [shape = 'u32[]', space=smem, size = 0x4, offset = 0x4, fixed_abs, tag = 'smem constant byte address 0x4 - core index']
  #allocation1 [shape = 'u32[72,128]{1,0:T(1,128)}', space=vmem, size = 0x9000, scoped, tag = 'internal scratch']
  %s0 = inlined_call_operand.hbm [shape: f32[16,256], index: 0, kind: input, shape index: {}]
  %s1 = inlined_call_operand.hbm [shape: bf16[256,128], index: 1, kind: input, shape index: {}]
  %s2 = inlined_call_operand.vmem [shape: f32[1,128], index: 2, kind: input, shape index: {}]
  %s3 = inlined_call_operand.hbm [shape: f32[16,128], index: 3, kind: output, shape index: {}]
  %s4 = sld [smem:[#allocation0]]
  $region30: #{tpu_custom_call.1} parent=0
    _
  %s6 = ssub.s32 1, %s4
  %s7 = scalar_select 0, %s6, %s4
  $region1: #{tpu_custom_call.1} parent=0
    #allocation2 [shape = 'u8[16384]{0}', space=vmem, size = 0x4000, scoped, tag = 'input window, operand 0, single buffered']
    #allocation3 [shape = 's32[1]{0}', space=sflag, size = 0x4, scoped, tag = 'scoped memory for tpu_custom_call.1']
    #allocation4 [shape = 's32[1]{0}', space=sflag, size = 0x4, scoped, tag = 'scoped memory for tpu_custom_call.1']
    #allocation5 [shape = 'u8[65536]{0}', space=vmem, size = 0x10000, scoped, tag = 'input window, operand 1, single buffered']
    #allocation6 [shape = 's32[1]{0}', space=sflag, size = 0x4, scoped, tag = 'scoped memory for tpu_custom_call.1']
    #allocation7 [shape = 'u8[8192]{0}', space=vmem, size = 0x2000, scoped, tag = 'output window, operand 0, single buffered']
    %8 = vsyncpa [#allocation3], 0
    %9 = vsyncpa [#allocation6], 0
    %10 = vsyncpa [#allocation4], 0
    // Predicated region
    $region2: #{tpu_custom_call.1} parent=1 // pred_check
      _
    $region3: #{tpu_custom_call.1} parent=1 // pred_check_branch
      %12 = sbr.rel (0) target = $region5
    $region4: #{tpu_custom_call.1} parent=1 // pred_region
      %14 = vsyncadd [#allocation3], 0
      %s15 = sshll.u32 %s0, 4
      %s16 = int_to_ptr.hbm [resolvable:$true] %s15
      %s17 = sshll.u32 [#allocation2], 4
      %s18 = int_to_ptr.vmem [resolvable:$true] %s17
      %23 = dma.hbm_to_vmem [thread:$0]  %s16, 512, %s18, [#allocation3], 256, 256, 16
    $region5: #{tpu_custom_call.1} parent=1 // pred_fallthru
      _
    // Predicated region
    $region6: #{tpu_custom_call.1} parent=1 // pred_check
      _
    $region7: #{tpu_custom_call.1} parent=1 // pred_check_branch
      %25 = sbr.rel (0) target = $region9
    $region8: #{tpu_custom_call.1} parent=1 // pred_region
      %27 = vsyncadd [#allocation6], 0
      %s28 = sshll.u32 %s1, 4
      %s29 = int_to_ptr.hbm [resolvable:$true] %s28
      %s30 = sshll.u32 [#allocation5], 4
      %s31 = int_to_ptr.vmem [resolvable:$true] %s30
      %36 = dma.hbm_to_vmem [thread:$0]  %s29, 2048, %s31, [#allocation6], 64, 64, 4
    $region9: #{tpu_custom_call.1} parent=1 // pred_fallthru
      _
    // Predicated region
    $region10: #{tpu_custom_call.1} parent=1 // pred_check
      _
    $region11: #{tpu_custom_call.1} parent=1 // pred_check_branch
      %38 = sbr.rel (0) target = $region13
    $region12: #{tpu_custom_call.1} parent=1 // pred_region
      _
    $region13: #{tpu_custom_call.1} parent=1 // pred_fallthru
      _
    // Predicated region
    $region14: #{tpu_custom_call.1} parent=1 // pred_check
      _
    $region15: #{tpu_custom_call.1} parent=1 // pred_check_branch
      %40 = sbr.rel (0) target = $region17
    $region16: #{tpu_custom_call.1} parent=1 // pred_region
      %42 = dma.done [#allocation3], 512
    $region17: #{tpu_custom_call.1} parent=1 // pred_fallthru
      _
    // Predicated region
    $region18: #{tpu_custom_call.1} parent=1 // pred_check
      _
    $region19: #{tpu_custom_call.1} parent=1 // pred_check_branch
      %44 = sbr.rel (0) target = $region21
    $region20: #{tpu_custom_call.1} parent=1 // pred_region
      %46 = dma.done [#allocation6], 2048
    $region21: #{tpu_custom_call.1} parent=1 // pred_fallthru
      _
    %v47 = vld [vmem:[#allocation2] sm:$0xff]
    %v48 = vld [vmem:[#allocation2 + $0x8] sm:$0xff]
    %v49 = vld [vmem:[#allocation2 + $0x10] sm:$0xff]
    %v50 = vld [vmem:[#allocation2 + $0x18] sm:$0xff]
    %v51 = vpack.c.bf16 %v49, %v47
    %v52 = vpack.c.bf16 %v50, %v48
    %v53 = vld [vmem:[#allocation5] sm:$0xf]
    %v54 = vld [vmem:[#allocation5 + $0x4] sm:$0xf]
    %v55 = vld [vmem:[#allocation5 + $0x8] sm:$0xf]
    %v56 = vld [vmem:[#allocation5 + $0xc] sm:$0xf]
    %v57 = vld [vmem:[#allocation5 + $0x10] sm:$0xf]
    %v58 = vld [vmem:[#allocation5 + $0x14] sm:$0xf]
    %v59 = vld [vmem:[#allocation5 + $0x18] sm:$0xf]
    %v60 = vld [vmem:[#allocation5 + $0x1c] sm:$0xf]
    %v61 = vld [vmem:[#allocation5 + $0x20] sm:$0xf]
    %v62 = vld [vmem:[#allocation5 + $0x24] sm:$0xf]
    %v63 = vld [vmem:[#allocation5 + $0x28] sm:$0xf]
    %v64 = vld [vmem:[#allocation5 + $0x2c] sm:$0xf]
    %v65 = vld [vmem:[#allocation5 + $0x30] sm:$0xf]
    %v66 = vld [vmem:[#allocation5 + $0x34] sm:$0xf]
    %v67 = vld [vmem:[#allocation5 + $0x38] sm:$0xf]
    %v68 = vld [vmem:[#allocation5 + $0x3c] sm:$0xf]
    %v69 = vld [vmem:[#allocation5 + $0x40] sm:$0xf]
    %v70 = vld [vmem:[#allocation5 + $0x44] sm:$0xf]
    %v71 = vld [vmem:[#allocation5 + $0x48] sm:$0xf]
    %v72 = vld [vmem:[#allocation5 + $0x4c] sm:$0xf]
    %v73 = vld [vmem:[#allocation5 + $0x50] sm:$0xf]
    %v74 = vld [vmem:[#allocation5 + $0x54] sm:$0xf]
    %v75 = vld [vmem:[#allocation5 + $0x58] sm:$0xf]
    %v76 = vld [vmem:[#allocation5 + $0x5c] sm:$0xf]
    %v77 = vld [vmem:[#allocation5 + $0x60] sm:$0xf]
    %v78 = vld [vmem:[#allocation5 + $0x64] sm:$0xf]
    %v79 = vld [vmem:[#allocation5 + $0x68] sm:$0xf]
    %v80 = vld [vmem:[#allocation5 + $0x6c] sm:$0xf]
    %v81 = vld [vmem:[#allocation5 + $0x70] sm:$0xf]
    %v82 = vld [vmem:[#allocation5 + $0x74] sm:$0xf]
    %v83 = vld [vmem:[#allocation5 + $0x78] sm:$0xf]
    %v84 = vld [vmem:[#allocation5 + $0x7c] sm:$0xf]
    %v85 = vld [vmem:[%s2] sm:$0x1]
    %v87 = vperm.slane %v85, 0
    %v121 = vunpack.c.l.b16 %v53
    %v122 = vunpack.c.l.b16 %v54
    %v123 = vunpack.c.l.b16 %v55
    %v124 = vunpack.c.l.b16 %v56
    %v125 = vunpack.c.l.b16 %v57
    %v126 = vunpack.c.l.b16 %v58
    %v127 = vunpack.c.l.b16 %v59
    %v128 = vunpack.c.l.b16 %v60
    %v129 = vunpack.c.l.b16 %v61
    %v130 = vunpack.c.l.b16 %v62
    %v131 = vunpack.c.l.b16 %v63
    %v132 = vunpack.c.l.b16 %v64
    %v133 = vunpack.c.l.b16 %v65
    %v134 = vunpack.c.l.b16 %v66
    %v135 = vunpack.c.l.b16 %v67
    %v136 = vunpack.c.l.b16 %v68
    %v137 = vunpack.c.l.b16 %v69
    %v138 = vunpack.c.l.b16 %v70
    %v139 = vunpack.c.l.b16 %v71
    %v140 = vunpack.c.l.b16 %v72
    %v141 = vunpack.c.l.b16 %v73
    %v142 = vunpack.c.l.b16 %v74
    %v143 = vunpack.c.l.b16 %v75
    %v144 = vunpack.c.l.b16 %v76
    %v145 = vunpack.c.l.b16 %v77
    %v146 = vunpack.c.l.b16 %v78
    %v147 = vunpack.c.l.b16 %v79
    %v148 = vunpack.c.l.b16 %v80
    %v149 = vunpack.c.l.b16 %v81
    %v150 = vunpack.c.l.b16 %v82
    %v151 = vunpack.c.l.b16 %v83
    %v152 = vunpack.c.l.b16 %v84
    %v153 = vpack.c.b16 %v122, %v121
    %v154 = vpack.c.b16 %v124, %v123
    %v155 = vpack.c.b16 %v126, %v125
    %v156 = vpack.c.b16 %v128, %v127
    %v157 = vpack.c.b16 %v130, %v129
    %v158 = vpack.c.b16 %v132, %v131
    %v159 = vpack.c.b16 %v134, %v133
    %v160 = vpack.c.b16 %v136, %v135
    %v161 = vpack.c.b16 %v138, %v137
    %v162 = vpack.c.b16 %v140, %v139
    %v163 = vpack.c.b16 %v142, %v141
    %v164 = vpack.c.b16 %v144, %v143
    %v165 = vpack.c.b16 %v146, %v145
    %v166 = vpack.c.b16 %v148, %v147
    %v167 = vpack.c.b16 %v150, %v149
    %v168 = vpack.c.b16 %v152, %v151
    %185 = vmatpush.bf16.msra.mxu0 %v160
    %186 = vmatpush.bf16.msra.mxu0 %v159
    %187 = vmatpush.bf16.msra.mxu0 %v158
    %188 = vmatpush.bf16.msra.mxu0 %v157
    %189 = vmatpush.bf16.msra.mxu0 %v156
    %190 = vmatpush.bf16.msra.mxu0 %v155
    %191 = vmatpush.bf16.msra.mxu0 %v154
    %192 = vmatpush.bf16.msra.mxu0 %v153
    %193 = vmatmul.bf16.gmra.mxu0 %v51
    %v194 = vpop.f32.mrf.mxu0
    %v195 = vadd.f32 %v87, %v194
    %v196 = vpop.f32.mrf.mxu0
    %v197 = vadd.f32 %v87, %v196
    %198 = vdwg.mxu0
    %199 = vmatpush.bf16.msra.mxu0 %v168
    %200 = vmatpush.bf16.msra.mxu0 %v167
    %201 = vmatpush.bf16.msra.mxu0 %v166
    %202 = vmatpush.bf16.msra.mxu0 %v165
    %203 = vmatpush.bf16.msra.mxu0 %v164
    %204 = vmatpush.bf16.msra.mxu0 %v163
    %205 = vmatpush.bf16.msra.mxu0 %v162
    %206 = vmatpush.bf16.msra.mxu0 %v161
    %207 = vmatmul.bf16.gmra.mxu0 %v52
    %v208 = vpop.f32.mrf.mxu0
    %v209 = vadd.f32 %v195, %v208
    %v210 = vpop.f32.mrf.mxu0
    %v211 = vadd.f32 %v197, %v210
    %212 = vdwg.mxu0
    %213 = vst [vmem:[#allocation7] sm:$0xff] %v209
    %214 = vst [vmem:[#allocation7 + $0x8] sm:$0xff] %v211
    // Predicated region
    $region22: #{tpu_custom_call.1} parent=1 // pred_check
      _
    $region23: #{tpu_custom_call.1} parent=1 // pred_check_branch
      %216 = sbr.rel (0) target = $region25
    $region24: #{tpu_custom_call.1} parent=1 // pred_region
      %218 = vsyncadd [#allocation4], 0
      %s219 = sshll.u32 [#allocation7], 4
      %s220 = int_to_ptr.vmem [resolvable:$true] %s219
      %s221 = sshll.u32 %s3, 4
      %s222 = int_to_ptr.hbm [resolvable:$true] %s221
      %227 = dma.vmem_to_hbm [thread:$0]  %s220, 256, %s222, [#allocation4], 128, 128, 8
    $region25: #{tpu_custom_call.1} parent=1 // pred_fallthru
      _
    // Predicated region
    $region26: #{tpu_custom_call.1} parent=1 // pred_check
      _
    $region27: #{tpu_custom_call.1} parent=1 // pred_check_branch
      %229 = sbr.rel (0) target = $region29
    $region28: #{tpu_custom_call.1} parent=1 // pred_region
      %231 = dma.done [#allocation4], 256
    $region29: #{tpu_custom_call.1} parent=1 // pred_fallthru
      _
    %232 = vsyncpa [#allocation3], 1
    %233 = vsyncpa [#allocation6], 1
    %234 = vsyncpa [#allocation4], 1

</llo_original>
